<compile_context>
chip_gen: v5e
topology: v5e:2x2
jax: 0.10.0
libtpu: 0.0.40
codegen_flags: <defaults>
</compile_context>

<pallas_src>
import functools

import jax
import jax.numpy as jnp
from jax.experimental import pallas as pl
from jax.experimental.pallas import tpu as pltpu


def _round_up(x, m):
    return (x + m - 1) // m * m


def _cdiv(a, b):
    return (a + b - 1) // b


# ---------------------------------------------------------------------------
# Kernel
# ---------------------------------------------------------------------------

def _residual_stack(x, w_refs, b_refs):
    """x: (rows, Cin) bf16 tile.  Returns (rows, Cp) f32."""

    def mm_bn_relu(h, w_ref, b_ref):
        # bf16 operands into the MXU, f32 accumulation, f32 epilogue.
        y = jnp.dot(h.astype(w_ref.dtype), w_ref[...],
                    preferred_element_type=jnp.float32)
        return jnp.maximum(y + b_ref[...], 0.0)

    h0 = mm_bn_relu(x,  w_refs[0], b_refs[0])   # expand_conv + expand_bn + relu
    h  = mm_bn_relu(h0, w_refs[1], b_refs[1])   # block 0, conv 0
    h  = mm_bn_relu(h,  w_refs[2], b_refs[2])   # block 0, conv 1
    h1 = h0 + h                                 # residual add 0
    h  = mm_bn_relu(h1, w_refs[3], b_refs[3])   # block 1, conv 0
    h  = mm_bn_relu(h,  w_refs[4], b_refs[4])   # block 1, conv 1
    return h1 + h                               # residual add 1


def part_feature_kernel(x_ref,
                        w0, b0, w1, b1, w2, b2, w3, b3, w4, b4,
                        o_ref, *, transpose_out):
    # x_ref : (tile, Cin) bf16 rows (channels last)
    # wK    : (Kin, Cp) bf16 conv weight with eval-BN scale folded in
    # bK    : (1, Cp)  f32 BN shift (bias before ReLU)
    # o_ref : (tile, Cp) f32     if not transpose_out
    #         (Cp, tile) f32     if transpose_out (NCHW written directly)
    y = _residual_stack(x_ref[...],
                        (w0, w1, w2, w3, w4),
                        (b0, b1, b2, b3, b4))
    if transpose_out:
        y = y.T                                  # XLU transpose, lane-dense store
    o_ref[...] = y.astype(o_ref.dtype)


# ---------------------------------------------------------------------------
# Wrapper
# ---------------------------------------------------------------------------

def _fold_bn(w_oc, gamma, beta, mean, var, eps):
    """w_oc: torch-style 1x1 conv weight (Cout, Cin) (kernel dims squeezed).
    Returns the matmul matrix (Cin, Cout) with the eval-BN scale folded in,
    plus the remaining BN shift as a bias."""
    scale = gamma / jnp.sqrt(var + eps)
    w_folded = (w_oc.T * scale[None, :]).astype(jnp.float32)
    bias = (beta - mean * scale).astype(jnp.float32)
    return w_folded, bias


def _prepare_weights(params, Cin, eps):
    ws, bs = [], []
    for (w_oc, gamma, beta, mean, var) in params:
        w, b = _fold_bn(w_oc, gamma, beta, mean, var, eps)
        ws.append(w)
        bs.append(b)
    channels = ws[0].shape[1]
    # Pad the channel dim to a multiple of 128 so every intermediate and the
    # output store are lane-dense.  Zero padding is exact: padded weight
    # rows/cols and biases are zero, so padded lanes stay 0 through relu and
    # the residual adds.
    Cp = _round_up(channels, 128)
    w_pad, b_pad = [], []
    for idx, (w, b) in enumerate(zip(ws, bs)):
        k_in = Cin if idx == 0 else Cp
        wp = jnp.zeros((k_in, Cp), jnp.float32).at[:w.shape[0], :channels].set(w)
        bp = jnp.zeros((1, Cp), jnp.float32).at[0, :channels].set(b)
        w_pad.append(wp.astype(jnp.bfloat16))    # bf16 MXU operands
        b_pad.append(bp)                         # shift stays f32 (epilogue)
    return channels, Cp, w_pad, b_pad


def _const_spec(shape, index_map, single_buffer):
    # Constant-index-map weights: single-buffer them at large widths so
    # 2x duplication of ~5*Cp^2 weights doesn't blow v7x's 64 MiB VMEM.
    if single_buffer:
        return pl.BlockSpec(shape, index_map, pipeline_mode=pl.Buffered(1))
    return pl.BlockSpec(shape, index_map)


def _maybe_vmem_limit(tile_rows_eff, Cin, Cp, single_buffer):
    """Rough per-step VMEM footprint; only set an explicit limit if it exceeds
    the small default (v5e scoped default is 16 MiB)."""
    wbuf = 1 if single_buffer else 2
    w_bytes = wbuf * (Cin * Cp + 4 * Cp * Cp) * 2                    # bf16 weights
    x_bytes = 2 * tile_rows_eff * max(_round_up(Cin, 128), 128) * 2  # lane-padded bf16 in
    o_bytes = 2 * tile_rows_eff * Cp * 4                             # f32 out (dbl buf)
    act_bytes = 3 * tile_rows_eff * Cp * 4                           # live f32 intermediates
    est = w_bytes + x_bytes + o_bytes + act_bytes
    if est > 10 * 1024 * 1024:
        return int(min(2 * est, 44 * 1024 * 1024))
    return None


def part_feature_forward(pos_2d, params, *, transform_dim, eps=1e-5,
                         tile_rows=1024, fuse_output_transpose=True):
    """pos_2d: (B, T, V1, C1+1, N) float32.  `params` is a list of 5 tuples
    (conv_weight (Cout, Cin), gamma, beta, running_mean, running_var) for
    expand_conv/expand_bn followed by conv_layers[0..3]/bn_layers[0..3].
    Returns (B, channels // transform_dim, transform_dim, T, N), matching
    PartFeatureModel.forward."""
    # TODO(synk): CONFIDENCE_METHOD 'concat' / 'modulate' (the MyConv einsum
    # branch) and training-mode dropout / batch-stat BN are not implemented;
    # this is the eval forward with CONFIDENCE_METHOD='no'.
    pos = pos_2d[:, :, :, :-1, :]                       # drop confidence chan
    B, T, V1, C1, N = pos.shape
    Cin = V1 * C1
    TN = T * N

    channels, Cp, w_pad, b_pad = _prepare_weights(params, Cin, eps)
    assert channels % transform_dim == 0
    single_buffer = Cp >= 512

    # (B, T, V1, C1, N) -> (B, T, N, V1, C1); channel order (v1, c1) matches
    # torch's permute(0,2,3,1,4).view(B, V1*C1, T, N).  bf16 input rows.
    x = jnp.transpose(pos, (0, 1, 4, 2, 3)).astype(jnp.bfloat16)

    use_nchw = fuse_output_transpose and TN >= 128

    if use_nchw:
        # ---- path A: grid (B, tiles of T*N), NCHW output written in-kernel.
        tile_cap = max(128, (tile_rows // 128) * 128)
        TN128 = _round_up(TN, 128)
        tile_tn = min(tile_cap, TN128)
        if B * _cdiv(TN128, tile_tn) < 2 and TN128 >= 256:
            tile_tn = _round_up(_cdiv(TN128, 2), 128)   # >=2 steps for v7x cores
        TN_pad = _round_up(TN, tile_tn)

        x_rows = x.reshape(B, TN, Cin)
        if TN_pad != TN:
            x_rows = jnp.zeros((B, TN_pad, Cin), jnp.bfloat16).at[:, :TN].set(x_rows)

        weight_args, weight_specs = [], []
        for w, b in zip(w_pad, b_pad):
            weight_args += [w, b]
            weight_specs += [_const_spec(w.shape, lambda bi, i: (0, 0), single_buffer),
                             pl.BlockSpec(b.shape, lambda bi, i: (0, 0))]

        out = pl.pallas_call(
            functools.partial(part_feature_kernel, transpose_out=True),
            out_shape=jax.ShapeDtypeStruct((B, Cp, TN_pad), jnp.float32),
            grid=(B, TN_pad // tile_tn),
            in_specs=[pl.BlockSpec((None, tile_tn, Cin),
                                   lambda bi, i: (bi, i, 0))] + weight_specs,
            out_specs=pl.BlockSpec((None, Cp, tile_tn), lambda bi, i: (bi, 0, i)),
            compiler_params=pltpu.CompilerParams(
                dimension_semantics=("parallel", "parallel"),
                vmem_limit_bytes=_maybe_vmem_limit(tile_tn, Cin, Cp, single_buffer)),
        )(x_rows, *weight_args)

        # Only cheap slicing/reshape left; no HBM transpose of the big tensor.
        out = out[:, :channels, :TN].reshape(B, channels, T, N)
    else:
        # ---- path B (small T*N): row matrix + wrapper transpose (fallback).
        M = B * TN
        tile_cap = max(16, (tile_rows // 16) * 16)
        M16 = _round_up(M, 16)
        if M16 <= tile_cap:
            tile_m = M16
            if M16 >= 512:                       # still split for megacore
                tile_m = _round_up(_cdiv(M16, 2), 16)
        else:
            tile_m = tile_cap
        M_pad = _round_up(M, tile_m)

        x_rows = x.reshape(M, Cin)
        if M_pad != M:
            x_rows = jnp.zeros((M_pad, Cin), jnp.bfloat16).at[:M].set(x_rows)

        weight_args, weight_specs = [], []
        for w, b in zip(w_pad, b_pad):
            weight_args += [w, b]
            weight_specs += [_const_spec(w.shape, lambda i: (0, 0), single_buffer),
                             pl.BlockSpec(b.shape, lambda i: (0, 0))]

        out_rows = pl.pallas_call(
            functools.partial(part_feature_kernel, transpose_out=False),
            out_shape=jax.ShapeDtypeStruct((M_pad, Cp), jnp.float32),
            grid=(M_pad // tile_m,),
            in_specs=[pl.BlockSpec((tile_m, Cin), lambda i: (i, 0))] + weight_specs,
            out_specs=pl.BlockSpec((tile_m, Cp), lambda i: (i, 0)),
            compiler_params=pltpu.CompilerParams(
                dimension_semantics=("parallel",),
                vmem_limit_bytes=_maybe_vmem_limit(tile_m, Cin, Cp, single_buffer)),
        )(x_rows, *weight_args)

        out = out_rows[:M, :channels].reshape(B, T, N, channels)
        out = jnp.transpose(out, (0, 3, 1, 2))          # (B, channels, T, N)

    return out.reshape(B, channels // transform_dim, transform_dim, T, N)


# ---------------------------------------------------------------------------
# Pure-JAX reference (mirror of the PyTorch eval forward, CONFIDENCE_METHOD='no')
# ---------------------------------------------------------------------------

def _reference(pos_2d, params, transform_dim, eps=1e-5):
    pos = pos_2d[:, :, :, :-1, :]
    B, T, V1, C1, N = pos.shape
    x = jnp.transpose(pos, (0, 2, 3, 1, 4)).reshape(B, V1 * C1, T, N)

    def conv_bn_relu(x, w_oc, gamma, beta, mean, var):
        y = jnp.einsum('bchw,oc->bohw', x, w_oc)
        scale = gamma / jnp.sqrt(var + eps)
        shift = beta - mean * scale
        y = y * scale[None, :, None, None] + shift[None, :, None, None]
        return jnp.maximum(y, 0.0)

    x = conv_bn_relu(x, *params[0])
    for i in range(2):
        res = x
        x = conv_bn_relu(x, *params[2 * i + 1])
        x = conv_bn_relu(x, *params[2 * i + 2])
        x = res + x
    return x.reshape(B, -1, transform_dim, T, N)


if __name__ == "__main__":
    # Small, module-consistent shapes:
    #   INPUT_DIM = 2, in_N (V1, joints) = 4  -> in_channels (Cin) = 8
    #   h_N = 16, TRANSFORM_DIM = 3           -> channels = 48
    #   B = 2 clips, T = 8 frames, N = 16 views  (T*N = 128 so the fused
    #   NCHW-output path is lane-dense and gets exercised).
    B, T, V1, C1, N = 2, 8, 4, 2, 16
    TD, h_N = 3, 16
    channels = h_N * TD
    Cin = V1 * C1

    key = jax.random.PRNGKey(0)
    keys = iter(jax.random.split(key, 64))

    # Input includes the confidence channel (C1 + 1) like the torch module.
    pos_2d = jax.random.normal(next(keys), (B, T, V1, C1 + 1, N), jnp.float32)

    def make_layer(cin, cout):
        w = jax.random.normal(next(keys), (cout, cin), jnp.float32) * 0.15
        gamma = 1.0 + 0.1 * jax.random.normal(next(keys), (cout,), jnp.float32)
        beta = 0.1 * jax.random.normal(next(keys), (cout,), jnp.float32)
        mean = 0.1 * jax.random.normal(next(keys), (cout,), jnp.float32)
        var = 0.5 + 0.5 * jnp.abs(jax.random.normal(next(keys), (cout,), jnp.float32))
        return (w, gamma, beta, mean, var)

    # expand_conv/expand_bn, then conv_layers[0..3] / bn_layers[0..3].
    params = [make_layer(Cin, channels)] + \
             [make_layer(channels, channels) for _ in range(4)]

    ref = _reference(pos_2d, params, TD)

    # Path A: fused in-kernel NCHW transpose (used since T*N >= 128).
    out_a = jax.block_until_ready(
        part_feature_forward(pos_2d, params, transform_dim=TD))
    # Path B: row-matrix fallback (forced here to validate both code paths).
    out_b = jax.block_until_ready(
        part_feature_forward(pos_2d, params, transform_dim=TD,
                             fuse_output_transpose=False))

    assert out_a.shape == (B, channels // TD, TD, T, N), out_a.shape
    assert out_b.shape == (B, channels // TD, TD, T, N), out_b.shape

    scale = float(jnp.max(jnp.abs(ref))) + 1e-6
    err_a = float(jnp.max(jnp.abs(out_a - ref))) / scale
    err_b = float(jnp.max(jnp.abs(out_b - ref))) / scale
    # bf16 MXU operands with f32 accumulation/epilogue: allow a few % of max|ref|.
    assert err_a < 5e-2, ("nchw path error", err_a)
    assert err_b < 5e-2, ("rows path error", err_b)
    print("KERNEL_OK")
</pallas_src>

<mosaic_0001>
module attributes {stable_mosaic.version = 11 : i64} {
  func.func @part_feature_kernel(%arg0: i32, %arg1: i32, %arg2: memref<1x128x8xbf16, #tpu.memory_space<vmem>>, %arg3: memref<8x128xbf16, #tpu.memory_space<vmem>>, %arg4: memref<1x128xf32, #tpu.memory_space<vmem>>, %arg5: memref<128x128xbf16, #tpu.memory_space<vmem>>, %arg6: memref<1x128xf32, #tpu.memory_space<vmem>>, %arg7: memref<128x128xbf16, #tpu.memory_space<vmem>>, %arg8: memref<1x128xf32, #tpu.memory_space<vmem>>, %arg9: memref<128x128xbf16, #tpu.memory_space<vmem>>, %arg10: memref<1x128xf32, #tpu.memory_space<vmem>>, %arg11: memref<128x128xbf16, #tpu.memory_space<vmem>>, %arg12: memref<1x128xf32, #tpu.memory_space<vmem>>, %arg13: memref<1x128x128xf32, #tpu.memory_space<vmem>>) attributes {dimension_semantics = [#tpu.dimension_semantics<parallel>, #tpu.dimension_semantics<parallel>], iteration_bounds = array<i64: 2, 1>, scalar_prefetch = 0 : i64, scratch_operands = 0 : i64, tpu.core_type = #tpu.core_type<tc>, window_params = [{transform_indices = @transform_0, window_bounds = array<i64: 1, 128, 8>}, {pipeline_mode = #tpu.pipeline_mode<synchronous>, transform_indices = @transform_1, window_bounds = array<i64: 8, 128>}, {pipeline_mode = #tpu.pipeline_mode<synchronous>, transform_indices = @transform_2, window_bounds = array<i64: 1, 128>}, {pipeline_mode = #tpu.pipeline_mode<synchronous>, transform_indices = @transform_3, window_bounds = array<i64: 128, 128>}, {pipeline_mode = #tpu.pipeline_mode<synchronous>, transform_indices = @transform_4, window_bounds = array<i64: 1, 128>}, {pipeline_mode = #tpu.pipeline_mode<synchronous>, transform_indices = @transform_5, window_bounds = array<i64: 128, 128>}, {pipeline_mode = #tpu.pipeline_mode<synchronous>, transform_indices = @transform_6, window_bounds = array<i64: 1, 128>}, {pipeline_mode = #tpu.pipeline_mode<synchronous>, transform_indices = @transform_7, window_bounds = array<i64: 128, 128>}, {pipeline_mode = #tpu.pipeline_mode<synchronous>, transform_indices = @transform_8, window_bounds = array<i64: 1, 128>}, {pipeline_mode = #tpu.pipeline_mode<synchronous>, transform_indices = @transform_9, window_bounds = array<i64: 128, 128>}, {pipeline_mode = #tpu.pipeline_mode<synchronous>, transform_indices = @transform_10, window_bounds = array<i64: 1, 128>}, {transform_indices = @transform_11, window_bounds = array<i64: 1, 128, 128>}]} {
    %c0 = arith.constant 0 : index
    %c0_0 = arith.constant 0 : index
    %c0_1 = arith.constant 0 : index
    %0 = vector.load %arg2[%c0, %c0_0, %c0_1] : memref<1x128x8xbf16, #tpu.memory_space<vmem>>, vector<1x128x8xbf16>
    %1 = vector.shape_cast %0 : vector<1x128x8xbf16> to vector<128x8xbf16>
    %c0_2 = arith.constant 0 : index
    %c0_3 = arith.constant 0 : index
    %2 = vector.load %arg3[%c0_2, %c0_3] : memref<8x128xbf16, #tpu.memory_space<vmem>>, vector<8x128xbf16>
    %cst = arith.constant dense<0.000000e+00> : vector<128x128xf32>
    %3 = tpu.matmul %1, %2, %cst {dimension_numbers = #tpu.dot_dimension_numbers<[1], [0], [0], [1], [0, 0, 1, 1], [], []>} : vector<128x8xbf16>, vector<8x128xbf16>, vector<128x128xf32> -> vector<128x128xf32>
    %c0_4 = arith.constant 0 : index
    %c0_5 = arith.constant 0 : index
    %4 = vector.load %arg4[%c0_4, %c0_5] : memref<1x128xf32, #tpu.memory_space<vmem>>, vector<1x128xf32>
    %5 = vector.broadcast %4 : vector<1x128xf32> to vector<128x128xf32>
    %6 = arith.addf %3, %5 : vector<128x128xf32>
    %cst_6 = arith.constant 0.000000e+00 : f32
    %7 = vector.broadcast %cst_6 : f32 to vector<128x128xf32>
    %8 = arith.maximumf %6, %7 : vector<128x128xf32>
    %9 = arith.truncf %8 : vector<128x128xf32> to vector<128x128xbf16>
    %c0_7 = arith.constant 0 : index
    %c0_8 = arith.constant 0 : index
    %10 = vector.load %arg5[%c0_7, %c0_8] : memref<128x128xbf16, #tpu.memory_space<vmem>>, vector<128x128xbf16>
    %cst_9 = arith.constant dense<0.000000e+00> : vector<128x128xf32>
    %11 = tpu.matmul %9, %10, %cst_9 {dimension_numbers = #tpu.dot_dimension_numbers<[1], [0], [0], [1], [0, 0, 1, 1], [], []>} : vector<128x128xbf16>, vector<128x128xbf16>, vector<128x128xf32> -> vector<128x128xf32>
    %c0_10 = arith.constant 0 : index
    %c0_11 = arith.constant 0 : index
    %12 = vector.load %arg6[%c0_10, %c0_11] : memref<1x128xf32, #tpu.memory_space<vmem>>, vector<1x128xf32>
    %13 = vector.broadcast %12 : vector<1x128xf32> to vector<128x128xf32>
    %14 = arith.addf %11, %13 : vector<128x128xf32>
    %cst_12 = arith.constant 0.000000e+00 : f32
    %15 = vector.broadcast %cst_12 : f32 to vector<128x128xf32>
    %16 = arith.maximumf %14, %15 : vector<128x128xf32>
    %17 = arith.truncf %16 : vector<128x128xf32> to vector<128x128xbf16>
    %c0_13 = arith.constant 0 : index
    %c0_14 = arith.constant 0 : index
    %18 = vector.load %arg7[%c0_13, %c0_14] : memref<128x128xbf16, #tpu.memory_space<vmem>>, vector<128x128xbf16>
    %cst_15 = arith.constant dense<0.000000e+00> : vector<128x128xf32>
    %19 = tpu.matmul %17, %18, %cst_15 {dimension_numbers = #tpu.dot_dimension_numbers<[1], [0], [0], [1], [0, 0, 1, 1], [], []>} : vector<128x128xbf16>, vector<128x128xbf16>, vector<128x128xf32> -> vector<128x128xf32>
    %c0_16 = arith.constant 0 : index
    %c0_17 = arith.constant 0 : index
    %20 = vector.load %arg8[%c0_16, %c0_17] : memref<1x128xf32, #tpu.memory_space<vmem>>, vector<1x128xf32>
    %21 = vector.broadcast %20 : vector<1x128xf32> to vector<128x128xf32>
    %22 = arith.addf %19, %21 : vector<128x128xf32>
    %cst_18 = arith.constant 0.000000e+00 : f32
    %23 = vector.broadcast %cst_18 : f32 to vector<128x128xf32>
    %24 = arith.maximumf %22, %23 : vector<128x128xf32>
    %25 = arith.addf %8, %24 : vector<128x128xf32>
    %26 = arith.truncf %25 : vector<128x128xf32> to vector<128x128xbf16>
    %c0_19 = arith.constant 0 : index
    %c0_20 = arith.constant 0 : index
    %27 = vector.load %arg9[%c0_19, %c0_20] : memref<128x128xbf16, #tpu.memory_space<vmem>>, vector<128x128xbf16>
    %cst_21 = arith.constant dense<0.000000e+00> : vector<128x128xf32>
    %28 = tpu.matmul %26, %27, %cst_21 {dimension_numbers = #tpu.dot_dimension_numbers<[1], [0], [0], [1], [0, 0, 1, 1], [], []>} : vector<128x128xbf16>, vector<128x128xbf16>, vector<128x128xf32> -> vector<128x128xf32>
    %c0_22 = arith.constant 0 : index
    %c0_23 = arith.constant 0 : index
    %29 = vector.load %arg10[%c0_22, %c0_23] : memref<1x128xf32, #tpu.memory_space<vmem>>, vector<1x128xf32>
    %30 = vector.broadcast %29 : vector<1x128xf32> to vector<128x128xf32>
    %31 = arith.addf %28, %30 : vector<128x128xf32>
    %cst_24 = arith.constant 0.000000e+00 : f32
    %32 = vector.broadcast %cst_24 : f32 to vector<128x128xf32>
    %33 = arith.maximumf %31, %32 : vector<128x128xf32>
    %34 = arith.truncf %33 : vector<128x128xf32> to vector<128x128xbf16>
    %c0_25 = arith.constant 0 : index
    %c0_26 = arith.constant 0 : index
    %35 = vector.load %arg11[%c0_25, %c0_26] : memref<128x128xbf16, #tpu.memory_space<vmem>>, vector<128x128xbf16>
    %cst_27 = arith.constant dense<0.000000e+00> : vector<128x128xf32>
    %36 = tpu.matmul %34, %35, %cst_27 {dimension_numbers = #tpu.dot_dimension_numbers<[1], [0], [0], [1], [0, 0, 1, 1], [], []>} : vector<128x128xbf16>, vector<128x128xbf16>, vector<128x128xf32> -> vector<128x128xf32>
    %c0_28 = arith.constant 0 : index
    %c0_29 = arith.constant 0 : index
    %37 = vector.load %arg12[%c0_28, %c0_29] : memref<1x128xf32, #tpu.memory_space<vmem>>, vector<1x128xf32>
    %38 = vector.broadcast %37 : vector<1x128xf32> to vector<128x128xf32>
    %39 = arith.addf %36, %38 : vector<128x128xf32>
    %cst_30 = arith.constant 0.000000e+00 : f32
    %40 = vector.broadcast %cst_30 : f32 to vector<128x128xf32>
    %41 = arith.maximumf %39, %40 : vector<128x128xf32>
    %42 = arith.addf %25, %41 : vector<128x128xf32>
    %43 = tpu.transpose %42, [1, 0] : vector<128x128xf32> -> vector<128x128xf32>
    %c0_31 = arith.constant 0 : index
    %c0_32 = arith.constant 0 : index
    %c0_33 = arith.constant 0 : index
    %44 = vector.load %arg13[%c0_31, %c0_32, %c0_33] : memref<1x128x128xf32, #tpu.memory_space<vmem>>, vector<1x128x128xf32>
    %45 = vector.shape_cast %44 : vector<1x128x128xf32> to vector<128x128xf32>
    %46 = vector.shape_cast %43 : vector<128x128xf32> to vector<1x128x128xf32>
    tpu.vector_store %arg13[%c0_31, %c0_32, %c0_33], %46 {strides = array<i32>} : memref<1x128x128xf32, #tpu.memory_space<vmem>>, vector<1x128x128xf32>,
    return
  }
  func.func @transform_0(%arg0: i32, %arg1: i32) -> (i32, i32, i32) {
    %c0_i32 = arith.constant 0 : i32
    %c0_i32_0 = arith.constant 0 : i32
    return %arg0, %arg1, %c0_i32 : i32, i32, i32
  }
  func.func @transform_1(%arg0: i32, %arg1: i32) -> (i32, i32) {
    %c0_i32 = arith.constant 0 : i32
    %c0_i32_0 = arith.constant 0 : i32
    %c0_i32_1 = arith.constant 0 : i32
    return %c0_i32, %c0_i32_0 : i32, i32
  }
  func.func @transform_2(%arg0: i32, %arg1: i32) -> (i32, i32) {
    %c0_i32 = arith.constant 0 : i32
    %c0_i32_0 = arith.constant 0 : i32
    %c0_i32_1 = arith.constant 0 : i32
    return %c0_i32, %c0_i32_0 : i32, i32
  }
  func.func @transform_3(%arg0: i32, %arg1: i32) -> (i32, i32) {
    %c0_i32 = arith.constant 0 : i32
    %c0_i32_0 = arith.constant 0 : i32
    %c0_i32_1 = arith.constant 0 : i32
    return %c0_i32, %c0_i32_0 : i32, i32
  }
  func.func @transform_4(%arg0: i32, %arg1: i32) -> (i32, i32) {
    %c0_i32 = arith.constant 0 : i32
    %c0_i32_0 = arith.constant 0 : i32
    %c0_i32_1 = arith.constant 0 : i32
    return %c0_i32, %c0_i32_0 : i32, i32
  }
  func.func @transform_5(%arg0: i32, %arg1: i32) -> (i32, i32) {
    %c0_i32 = arith.constant 0 : i32
    %c0_i32_0 = arith.constant 0 : i32
    %c0_i32_1 = arith.constant 0 : i32
    return %c0_i32, %c0_i32_0 : i32, i32
  }
  func.func @transform_6(%arg0: i32, %arg1: i32) -> (i32, i32) {
    %c0_i32 = arith.constant 0 : i32
    %c0_i32_0 = arith.constant 0 : i32
    %c0_i32_1 = arith.constant 0 : i32
    return %c0_i32, %c0_i32_0 : i32, i32
  }
  func.func @transform_7(%arg0: i32, %arg1: i32) -> (i32, i32) {
    %c0_i32 = arith.constant 0 : i32
    %c0_i32_0 = arith.constant 0 : i32
    %c0_i32_1 = arith.constant 0 : i32
    return %c0_i32, %c0_i32_0 : i32, i32
  }
  func.func @transform_8(%arg0: i32, %arg1: i32) -> (i32, i32) {
    %c0_i32 = arith.constant 0 : i32
    %c0_i32_0 = arith.constant 0 : i32
    %c0_i32_1 = arith.constant 0 : i32
    return %c0_i32, %c0_i32_0 : i32, i32
  }
  func.func @transform_9(%arg0: i32, %arg1: i32) -> (i32, i32) {
    %c0_i32 = arith.constant 0 : i32
    %c0_i32_0 = arith.constant 0 : i32
    %c0_i32_1 = arith.constant 0 : i32
    return %c0_i32, %c0_i32_0 : i32, i32
  }
  func.func @transform_10(%arg0: i32, %arg1: i32) -> (i32, i32) {
    %c0_i32 = arith.constant 0 : i32
    %c0_i32_0 = arith.constant 0 : i32
    %c0_i32_1 = arith.constant 0 : i32
    return %c0_i32, %c0_i32_0 : i32, i32
  }
  func.func @transform_11(%arg0: i32, %arg1: i32) -> (i32, i32, i32) {
    %c0_i32 = arith.constant 0 : i32
    %c0_i32_0 = arith.constant 0 : i32
    return %arg0, %c0_i32, %arg1 : i32, i32, i32
  }
}

</mosaic_0001>

<llo_original>
// kernel: tpu_custom_call.1
$region0: #{tpu_custom_call.1}
  #allocation0 [shape = 'u32[]', space=smem, size = 0x4, offset = 0x4, fixed_abs, tag = 'smem constant byte address 0x4 - core index']
  #allocation1 [shape = 'u32[72,128]{1,0:T(1,128)}', space=vmem, size = 0x9000, scoped, tag = 'internal scratch']
  %s0 = inlined_call_operand.vmem [shape: bf16[2,128,8], index: 0, kind: input, shape index: {}]
  %s1 = inlined_call_operand.vmem [shape: bf16[8,128], index: 1, kind: input, shape index: {}]
  %s2 = inlined_call_operand.vmem [shape: f32[1,128], index: 2, kind: input, shape index: {}]
  %s3 = inlined_call_operand.vmem [shape: bf16[128,128], index: 3, kind: input, shape index: {}]
  %s4 = inlined_call_operand.vmem [shape: f32[1,128], index: 4, kind: input, shape index: {}]
  %s5 = inlined_call_operand.vmem [shape: bf16[128,128], index: 5, kind: input, shape index: {}]
  %s6 = inlined_call_operand.vmem [shape: f32[1,128], index: 6, kind: input, shape index: {}]
  %s7 = inlined_call_operand.hbm [shape: bf16[128,128], index: 7, kind: input, shape index: {}]
  %s8 = inlined_call_operand.vmem [shape: f32[1,128], index: 8, kind: input, shape index: {}]
  %s9 = inlined_call_operand.hbm [shape: bf16[128,128], index: 9, kind: input, shape index: {}]
  %s10 = inlined_call_operand.vmem [shape: f32[1,128], index: 10, kind: input, shape index: {}]
  %s11 = inlined_call_operand.hbm [shape: f32[2,128,128], index: 11, kind: output, shape index: {}]
  %s12 = sld [smem:[#allocation0]]
  $region85: #{tpu_custom_call.1} parent=0
    _
  %s14 = ssub.s32 1, %s12
  %s15 = scalar_select 0, %s14, %s12
  $region1: #{tpu_custom_call.1} parent=0
    #allocation2 [shape = 'u8[32768]{0}', space=vmem, size = 0x8000, scoped, tag = 'input window, operand 7, single buffered']
    #allocation3 [shape = 's32[2]{0}', space=sflag, size = 0x8, scoped, tag = 'scoped memory for tpu_custom_call.1']
    #allocation4 [shape = 's32[2]{0}', space=sflag, size = 0x8, scoped, tag = 'scoped memory for tpu_custom_call.1']
    #allocation5 [shape = 'u8[32768]{0}', space=vmem, size = 0x8000, scoped, tag = 'input window, operand 9, single buffered']
    #allocation6 [shape = 's32[1]{0}', space=sflag, size = 0x4, scoped, tag = 'scoped memory for tpu_custom_call.1']
    #allocation7 [shape = 'u8[131072]{0}', space=vmem, size = 0x20000, scoped, tag = 'output window, operand 0']
    %16 = vsyncpa [#allocation3], 0
    %17 = vsyncpa [#allocation6], 0
    %18 = vsyncpa [#allocation4], 0
    %s19 = scalar_lea.sflag [#allocation4], 1
    %20 = vsyncpa %s19, 0
    loop: start=0, step=1, limit=4
    $region2: #{tpu_custom_call.1} parent=1 // loop_pre_header
      _
    $region3: #{tpu_custom_call.1} parent=1 // loop_header
      %s22 = sphi 0, %s26
      %p23 = scmp.ge.s32.totalorder %s22, 4
      %s29 = sphi 0, %s41
      %s30 = sphi 0, %s37
      %s31 = sphi 0, %s29
      %s32 = sphi 0, %s30
      %s33 = sphi 0, %s31
      %s34 = sphi 0, %s32
      %s46 = sphi 0, %s48
      %s49 = sphi 0, %s46
      %s50 = sphi 0, %s49
      %s66 = sphi 0, %s50
      %s70 = sphi 0, %s70
      %s72 = sphi 0, %s70
      %s73 = sphi 0, %s72
      %s87 = sphi 0, %s73
      %s91 = sphi 0, %s91
      %s93 = sphi 0, %s91
      %s94 = sphi 0, %s93
      %s108 = sphi 0, %s94
      %s112 = sphi 0, %s112
      %s114 = sphi 0, %s112
      %s115 = sphi 0, %s114
      %s129 = sphi 0, %s115
      %s133 = sphi 0, %s133
      %s135 = sphi 0, %s133
      %s136 = sphi 0, %s135
      %s150 = sphi 0, %s136
      %s154 = sphi 0, %s154
      %s156 = sphi 0, %s154
      %s157 = sphi 0, %s156
      %s171 = sphi 0, %s157
      %s175 = sphi 0, %s175
      %s177 = sphi 0, %s175
      %s178 = sphi 0, %s177
      %s192 = sphi 0, %s178
      %s196 = sphi 0, %s196
      %s198 = sphi 0, %s196
      %s199 = sphi 0, %s198
      %s213 = sphi 0, %s199
      %s217 = sphi 0, %s217
      %s219 = sphi 0, %s217
      %s220 = sphi 0, %s219
      %s234 = sphi 0, %s220
      %s238 = sphi 0, %s238
      %s240 = sphi 0, %s238
      %s241 = sphi 0, %s240
      %s255 = sphi 0, %s241
      %s259 = sphi 0, %s259
      %s261 = sphi 0, %s259
      %s262 = sphi 0, %s261
      %s276 = sphi 0, %s262
      %s284 = sphi 0, %s286
      %s287 = sphi 0, %s284
      %s288 = sphi 0, %s287
      %s304 = sphi 0, %s288
    $region4: #{tpu_custom_call.1} parent=1 // loop_header_branch
      %25 = sbr.rel (%p23) target = $region8
    $region5: #{tpu_custom_call.1} parent=1 // loop_body
      %s27 = ssub.s32 %s22, 1
      %s28 = ssub.s32 %s22, 2
      %s35 = sadd.s32 1, %s30
      %p36 = scmp.ge.s32.totalorder %s35, 1
      %s37 = scalar_select %p36, 0, %s35
      %s38 = sadd.s32 1, %s29
      %s39 = scalar_select %p36, %s38, %s29
      %p40 = scmp.ge.s32.totalorder %s39, 2
      %s41 = scalar_select %p40, 0, %s39
      %s42 = ssub.s32 %s29, %s41
      %s43 = ssub.s32 %s30, %s37
      %s44 = sor.u32 %s42, %s43
      %p45 = scmp.eq.s32.totalorder %s44, 0
      %s47 = sadd.s32 %s46, 1
      %s48 = scalar_select %p45, %s46, %s47
      %p51 = pneg %p45
      %p52 = scmp.eq.s32.totalorder %s22, 1
      %p53 = por %p51, %p52
      %p54 = scmp.ne.s32.totalorder %s46, %s49
      %p55 = scmp.eq.s32.totalorder %s22, 0
      %p56 = por %p54, %p55
      %p57 = scmp.ne.s32.totalorder %s46, %s49
      %p58 = scmp.eq.s32.totalorder %s27, 1
      %p59 = por %p57, %p58
      %p60 = scmp.ne.s32.totalorder %s49, %s50
      %p61 = scmp.eq.s32.totalorder %s27, 0
      %p62 = por %p60, %p61
      %p63 = scmp.ne.s32.totalorder %s49, %s50
      %p64 = scmp.eq.s32.totalorder %s28, 1
      %p65 = por %p63, %p64
      %p67 = scmp.ne.s32.totalorder %s50, %s66
      %p68 = scmp.eq.s32.totalorder %s28, 0
      %p69 = por %p67, %p68
      %s71 = sadd.s32 %s70, 1
      %p74 = scmp.eq.s32.totalorder %s22, 1
      %p75 = scmp.ne.s32.totalorder %s70, %s72
      %p76 = scmp.eq.s32.totalorder %s22, 0
      %p77 = por %p75, %p76
      %p78 = scmp.ne.s32.totalorder %s70, %s72
      %p79 = scmp.eq.s32.totalorder %s27, 1
      %p80 = por %p78, %p79
      %p81 = scmp.ne.s32.totalorder %s72, %s73
      %p82 = scmp.eq.s32.totalorder %s27, 0
      %p83 = por %p81, %p82
      %p84 = scmp.ne.s32.totalorder %s72, %s73
      %p85 = scmp.eq.s32.totalorder %s28, 1
      %p86 = por %p84, %p85
      %p88 = scmp.ne.s32.totalorder %s73, %s87
      %p89 = scmp.eq.s32.totalorder %s28, 0
      %p90 = por %p88, %p89
      %s92 = sadd.s32 %s91, 1
      %p95 = scmp.eq.s32.totalorder %s22, 1
      %p96 = scmp.ne.s32.totalorder %s91, %s93
      %p97 = scmp.eq.s32.totalorder %s22, 0
      %p98 = por %p96, %p97
      %p99 = scmp.ne.s32.totalorder %s91, %s93
      %p100 = scmp.eq.s32.totalorder %s27, 1
      %p101 = por %p99, %p100
      %p102 = scmp.ne.s32.totalorder %s93, %s94
      %p103 = scmp.eq.s32.totalorder %s27, 0
      %p104 = por %p102, %p103
      %p105 = scmp.ne.s32.totalorder %s93, %s94
      %p106 = scmp.eq.s32.totalorder %s28, 1
      %p107 = por %p105, %p106
      %p109 = scmp.ne.s32.totalorder %s94, %s108
      %p110 = scmp.eq.s32.totalorder %s28, 0
      %p111 = por %p109, %p110
      %s113 = sadd.s32 %s112, 1
      %p116 = scmp.eq.s32.totalorder %s22, 1
      %p117 = scmp.ne.s32.totalorder %s112, %s114
      %p118 = scmp.eq.s32.totalorder %s22, 0
      %p119 = por %p117, %p118
      %p120 = scmp.ne.s32.totalorder %s112, %s114
      %p121 = scmp.eq.s32.totalorder %s27, 1
      %p122 = por %p120, %p121
      %p123 = scmp.ne.s32.totalorder %s114, %s115
      %p124 = scmp.eq.s32.totalorder %s27, 0
      %p125 = por %p123, %p124
      %p126 = scmp.ne.s32.totalorder %s114, %s115
      %p127 = scmp.eq.s32.totalorder %s28, 1
      %p128 = por %p126, %p127
      %p130 = scmp.ne.s32.totalorder %s115, %s129
      %p131 = scmp.eq.s32.totalorder %s28, 0
      %p132 = por %p130, %p131
      %s134 = sadd.s32 %s133, 1
      %p137 = scmp.eq.s32.totalorder %s22, 1
      %p138 = scmp.ne.s32.totalorder %s133, %s135
      %p139 = scmp.eq.s32.totalorder %s22, 0
      %p140 = por %p138, %p139
      %p141 = scmp.ne.s32.totalorder %s133, %s135
      %p142 = scmp.eq.s32.totalorder %s27, 1
      %p143 = por %p141, %p142
      %p144 = scmp.ne.s32.totalorder %s135, %s136
      %p145 = scmp.eq.s32.totalorder %s27, 0
      %p146 = por %p144, %p145
      %p147 = scmp.ne.s32.totalorder %s135, %s136
      %p148 = scmp.eq.s32.totalorder %s28, 1
      %p149 = por %p147, %p148
      %p151 = scmp.ne.s32.totalorder %s136, %s150
      %p152 = scmp.eq.s32.totalorder %s28, 0
      %p153 = por %p151, %p152
      %s155 = sadd.s32 %s154, 1
      %p158 = scmp.eq.s32.totalorder %s22, 1
      %p159 = scmp.ne.s32.totalorder %s154, %s156
      %p160 = scmp.eq.s32.totalorder %s22, 0
      %p161 = por %p159, %p160
      %p162 = scmp.ne.s32.totalorder %s154, %s156
      %p163 = scmp.eq.s32.totalorder %s27, 1
      %p164 = por %p162, %p163
      %p165 = scmp.ne.s32.totalorder %s156, %s157
      %p166 = scmp.eq.s32.totalorder %s27, 0
      %p167 = por %p165, %p166
      %p168 = scmp.ne.s32.totalorder %s156, %s157
      %p169 = scmp.eq.s32.totalorder %s28, 1
      %p170 = por %p168, %p169
      %p172 = scmp.ne.s32.totalorder %s157, %s171
      %p173 = scmp.eq.s32.totalorder %s28, 0
      %p174 = por %p172, %p173
      %s176 = sadd.s32 %s175, 1
      %p179 = scmp.eq.s32.totalorder %s22, 1
      %p180 = scmp.ne.s32.totalorder %s175, %s177
      %p181 = scmp.eq.s32.totalorder %s22, 0
      %p182 = por %p180, %p181
      %p183 = scmp.ne.s32.totalorder %s175, %s177
      %p184 = scmp.eq.s32.totalorder %s27, 1
      %p185 = por %p183, %p184
      %p186 = scmp.ne.s32.totalorder %s177, %s178
      %p187 = scmp.eq.s32.totalorder %s27, 0
      %p188 = por %p186, %p187
      %p189 = scmp.ne.s32.totalorder %s177, %s178
      %p190 = scmp.eq.s32.totalorder %s28, 1
      %p191 = por %p189, %p190
      %p193 = scmp.ne.s32.totalorder %s178, %s192
      %p194 = scmp.eq.s32.totalorder %s28, 0
      %p195 = por %p193, %p194
      %s197 = sadd.s32 %s196, 1
      %p200 = scmp.eq.s32.totalorder %s22, 1
      %p201 = scmp.ne.s32.totalorder %s196, %s198
      %p202 = scmp.eq.s32.totalorder %s22, 0
      %p203 = por %p201, %p202
      %p204 = scmp.ne.s32.totalorder %s196, %s198
      %p205 = scmp.eq.s32.totalorder %s27, 1
      %p206 = por %p204, %p205
      %p207 = scmp.ne.s32.totalorder %s198, %s199
      %p208 = scmp.eq.s32.totalorder %s27, 0
      %p209 = por %p207, %p208
      %p210 = scmp.ne.s32.totalorder %s198, %s199
      %p211 = scmp.eq.s32.totalorder %s28, 1
      %p212 = por %p210, %p211
      %p214 = scmp.ne.s32.totalorder %s199, %s213
      %p215 = scmp.eq.s32.totalorder %s28, 0
      %p216 = por %p214, %p215
      %s218 = sadd.s32 %s217, 1
      %p221 = scmp.eq.s32.totalorder %s22, 1
      %p222 = scmp.ne.s32.totalorder %s217, %s219
      %p223 = scmp.eq.s32.totalorder %s22, 0
      %p224 = por %p222, %p223
      %p225 = scmp.ne.s32.totalorder %s217, %s219
      %p226 = scmp.eq.s32.totalorder %s27, 1
      %p227 = por %p225, %p226
      %p228 = scmp.ne.s32.totalorder %s219, %s220
      %p229 = scmp.eq.s32.totalorder %s27, 0
      %p230 = por %p228, %p229
      %p231 = scmp.ne.s32.totalorder %s219, %s220
      %p232 = scmp.eq.s32.totalorder %s28, 1
      %p233 = por %p231, %p232
      %p235 = scmp.ne.s32.totalorder %s220, %s234
      %p236 = scmp.eq.s32.totalorder %s28, 0
      %p237 = por %p235, %p236
      %s239 = sadd.s32 %s238, 1
      %p242 = scmp.eq.s32.totalorder %s22, 1
      %p243 = scmp.ne.s32.totalorder %s238, %s240
      %p244 = scmp.eq.s32.totalorder %s22, 0
      %p245 = por %p243, %p244
      %p246 = scmp.ne.s32.totalorder %s238, %s240
      %p247 = scmp.eq.s32.totalorder %s27, 1
      %p248 = por %p246, %p247
      %p249 = scmp.ne.s32.totalorder %s240, %s241
      %p250 = scmp.eq.s32.totalorder %s27, 0
      %p251 = por %p249, %p250
      %p252 = scmp.ne.s32.totalorder %s240, %s241
      %p253 = scmp.eq.s32.totalorder %s28, 1
      %p254 = por %p252, %p253
      %p256 = scmp.ne.s32.totalorder %s241, %s255
      %p257 = scmp.eq.s32.totalorder %s28, 0
      %p258 = por %p256, %p257
      %s260 = sadd.s32 %s259, 1
      %p263 = scmp.eq.s32.totalorder %s22, 1
      %p264 = scmp.ne.s32.totalorder %s259, %s261
      %p265 = scmp.eq.s32.totalorder %s22, 0
      %p266 = por %p264, %p265
      %p267 = scmp.ne.s32.totalorder %s259, %s261
      %p268 = scmp.eq.s32.totalorder %s27, 1
      %p269 = por %p267, %p268
      %p270 = scmp.ne.s32.totalorder %s261, %s262
      %p271 = scmp.eq.s32.totalorder %s27, 0
      %p272 = por %p270, %p271
      %p273 = scmp.ne.s32.totalorder %s261, %s262
      %p274 = scmp.eq.s32.totalorder %s28, 1
      %p275 = por %p273, %p274
      %p277 = scmp.ne.s32.totalorder %s262, %s276
      %p278 = scmp.eq.s32.totalorder %s28, 0
      %p279 = por %p277, %p278
      %s280 = ssub.s32 %s29, %s41
      %s281 = ssub.s32 %s30, %s37
      %s282 = sor.u32 %s280, %s281
      %p283 = scmp.eq.s32.totalorder %s282, 0
      %s285 = sadd.s32 %s284, 1
      %s286 = scalar_select %p283, %s284, %s285
      %p289 = pneg %p283
      %p290 = scmp.eq.s32.totalorder %s22, 1
      %p291 = por %p289, %p290
      %p292 = scmp.ne.s32.totalorder %s284, %s287
      %p293 = scmp.eq.s32.totalorder %s22, 0
      %p294 = por %p292, %p293
      %p295 = scmp.ne.s32.totalorder %s284, %s287
      %p296 = scmp.eq.s32.totalorder %s27, 1
      %p297 = por %p295, %p296
      %p298 = scmp.ne.s32.totalorder %s287, %s288
      %p299 = scmp.eq.s32.totalorder %s27, 0
      %p300 = por %p298, %p299
      %p301 = scmp.ne.s32.totalorder %s287, %s288
      %p302 = scmp.eq.s32.totalorder %s28, 1
      %p303 = por %p301, %p302
      %p305 = scmp.ne.s32.totalorder %s288, %s304
      %p306 = scmp.eq.s32.totalorder %s28, 0
      %p307 = por %p305, %p306
      %p308 = scmp.le.s32.totalorder 1, %s22
      %p309 = scmp.lt.s32.totalorder %s22, 3
      %p310 = pnand %p308, %p309
      %p311 = pneg %p310
      // Predicated region
      $region9: #{tpu_custom_call.1} parent=5 // pred_check
        _
      $region10: #{tpu_custom_call.1} parent=5 // pred_check_branch
        %313 = sbr.rel (%p310) target = $region12
      $region11: #{tpu_custom_call.1} parent=5 // pred_region
        %s314 = ssub.s32 %s22, 1
        // Predicated region
        $region13: #{tpu_custom_call.1} parent=11 // pred_check
          %p315 = pneg %p83
        $region14: #{tpu_custom_call.1} parent=11 // pred_check_branch
          %317 = sbr.rel (%p315) target = $region16
        $region15: #{tpu_custom_call.1} parent=11 // pred_region
          _
        $region16: #{tpu_custom_call.1} parent=11 // pred_fallthru
          _
        // Predicated region
        $region17: #{tpu_custom_call.1} parent=11 // pred_check
          %p318 = pneg %p104
        $region18: #{tpu_custom_call.1} parent=11 // pred_check_branch
          %320 = sbr.rel (%p318) target = $region20
        $region19: #{tpu_custom_call.1} parent=11 // pred_region
          _
        $region20: #{tpu_custom_call.1} parent=11 // pred_fallthru
          _
        // Predicated region
        $region21: #{tpu_custom_call.1} parent=11 // pred_check
          %p321 = pneg %p125
        $region22: #{tpu_custom_call.1} parent=11 // pred_check_branch
          %323 = sbr.rel (%p321) target = $region24
        $region23: #{tpu_custom_call.1} parent=11 // pred_region
          _
        $region24: #{tpu_custom_call.1} parent=11 // pred_fallthru
          _
        // Predicated region
        $region25: #{tpu_custom_call.1} parent=11 // pred_check
          %p324 = pneg %p146
        $region26: #{tpu_custom_call.1} parent=11 // pred_check_branch
          %326 = sbr.rel (%p324) target = $region28
        $region27: #{tpu_custom_call.1} parent=11 // pred_region
          _
        $region28: #{tpu_custom_call.1} parent=11 // pred_fallthru
          _
        // Predicated region
        $region29: #{tpu_custom_call.1} parent=11 // pred_check
          %p327 = pneg %p167
        $region30: #{tpu_custom_call.1} parent=11 // pred_check_branch
          %329 = sbr.rel (%p327) target = $region32
        $region31: #{tpu_custom_call.1} parent=11 // pred_region
          _
        $region32: #{tpu_custom_call.1} parent=11 // pred_fallthru
          _
        // Predicated region
        $region33: #{tpu_custom_call.1} parent=11 // pred_check
          %p330 = pneg %p188
        $region34: #{tpu_custom_call.1} parent=11 // pred_check_branch
          %332 = sbr.rel (%p330) target = $region36
        $region35: #{tpu_custom_call.1} parent=11 // pred_region
          _
        $region36: #{tpu_custom_call.1} parent=11 // pred_fallthru
          _
        // Predicated region
        $region37: #{tpu_custom_call.1} parent=11 // pred_check
          %p333 = pneg %p209
        $region38: #{tpu_custom_call.1} parent=11 // pred_check_branch
          %335 = sbr.rel (%p333) target = $region40
        $region39: #{tpu_custom_call.1} parent=11 // pred_region
          %337 = vsyncadd [#allocation3], 0
          %s338 = sshll.u32 %s7, 4
          %s339 = int_to_ptr.hbm [resolvable:$true] %s338
          %s340 = sshll.u32 [#allocation2], 4
          %s341 = int_to_ptr.vmem [resolvable:$true] %s340
          %346 = dma.hbm_to_vmem [thread:$0]  %s339, 1024, %s341, [#allocation3], 64, 64, 4
        $region40: #{tpu_custom_call.1} parent=11 // pred_fallthru
          _
        // Predicated region
        $region41: #{tpu_custom_call.1} parent=11 // pred_check
          %p347 = pneg %p230
        $region42: #{tpu_custom_call.1} parent=11 // pred_check_branch
          %349 = sbr.rel (%p347) target = $region44
        $region43: #{tpu_custom_call.1} parent=11 // pred_region
          _
        $region44: #{tpu_custom_call.1} parent=11 // pred_fallthru
          _
        // Predicated region
        $region45: #{tpu_custom_call.1} parent=11 // pred_check
          %p350 = pneg %p251
        $region46: #{tpu_custom_call.1} parent=11 // pred_check_branch
          %352 = sbr.rel (%p350) target = $region48
        $region47: #{tpu_custom_call.1} parent=11 // pred_region
          %354 = vsyncadd [#allocation6], 0
          %s355 = sshll.u32 %s9, 4
          %s356 = int_to_ptr.hbm [resolvable:$true] %s355
          %s357 = sshll.u32 [#allocation5], 4
          %s358 = int_to_ptr.vmem [resolvable:$true] %s357
          %363 = dma.hbm_to_vmem [thread:$0]  %s356, 1024, %s358, [#allocation6], 64, 64, 4
        $region48: #{tpu_custom_call.1} parent=11 // pred_fallthru
          _
        // Predicated region
        $region49: #{tpu_custom_call.1} parent=11 // pred_check
          %p364 = pneg %p272
        $region50: #{tpu_custom_call.1} parent=11 // pred_check_branch
          %366 = sbr.rel (%p364) target = $region52
        $region51: #{tpu_custom_call.1} parent=11 // pred_region
          _
        $region52: #{tpu_custom_call.1} parent=11 // pred_fallthru
          _
      $region12: #{tpu_custom_call.1} parent=5 // pred_fallthru
        _
      %p367 = scmp.lt.s32.totalorder %s22, 2
      // Predicated region
      $region53: #{tpu_custom_call.1} parent=5 // pred_check
        %p368 = pneg %p367
      $region54: #{tpu_custom_call.1} parent=5 // pred_check_branch
        %370 = sbr.rel (%p368) target = $region56
      $region55: #{tpu_custom_call.1} parent=5 // pred_region
        // Predicated region
        $region57: #{tpu_custom_call.1} parent=55 // pred_check
          %p371 = pneg %p56
        $region58: #{tpu_custom_call.1} parent=55 // pred_check_branch
          %373 = sbr.rel (%p371) target = $region60
        $region59: #{tpu_custom_call.1} parent=55 // pred_region
          %s374 = smul.u32 16, %s30
          %p375 = scmp.lt.s32.totalorder %s29, 1
          %s376 = scalar_select %p375, %s29, 1
          %p377 = scmp.lt.s32.totalorder %s374, 15
          %s378 = scalar_select %p377, %s374, 15
          %s379 = smul.addr %s376, 16
          %s380 = sadd.s32 %s378, %s379
          %s381 = smul.addr %s380, 4
          %s382 = scalar_lea.vmem %s0, %s381
          %s383 = smul.u32 16, %s30
        $region60: #{tpu_custom_call.1} parent=55 // pred_fallthru
          _
      $region56: #{tpu_custom_call.1} parent=5 // pred_fallthru
        _
      %p384 = scmp.le.s32.totalorder 1, %s22
      %p385 = scmp.lt.s32.totalorder %s22, 3
      %p386 = pnand %p384, %p385
      %p387 = pneg %p386
      // Predicated region
      $region61: #{tpu_custom_call.1} parent=5 // pred_check
        _
      $region62: #{tpu_custom_call.1} parent=5 // pred_check_branch
        %389 = sbr.rel (%p386) target = $region64
      $region63: #{tpu_custom_call.1} parent=5 // pred_region
        %s390 = ssub.s32 %s22, 1
        // Predicated region
        $region65: #{tpu_custom_call.1} parent=63 // pred_check
          %p391 = pneg %p209
        $region66: #{tpu_custom_call.1} parent=63 // pred_check_branch
          %393 = sbr.rel (%p391) target = $region68
        $region67: #{tpu_custom_call.1} parent=63 // pred_region
          %395 = dma.done [#allocation3], 1024
        $region68: #{tpu_custom_call.1} parent=63 // pred_fallthru
          _
        // Predicated region
        $region69: #{tpu_custom_call.1} parent=63 // pred_check
          %p396 = pneg %p251
        $region70: #{tpu_custom_call.1} parent=63 // pred_check_branch
          %398 = sbr.rel (%p396) target = $region72
        $region71: #{tpu_custom_call.1} parent=63 // pred_region
          %400 = dma.done [#allocation6], 1024
        $region72: #{tpu_custom_call.1} parent=63 // pred_fallthru
          _
        %s401 = smul.u32 16, %s32
        %p402 = scmp.lt.s32.totalorder %s31, 1
        %s403 = scalar_select %p402, %s31, 1
        %p404 = scmp.lt.s32.totalorder %s401, 15
        %s405 = scalar_select %p404, %s401, 15
        %s406 = smul.addr %s403, 16
        %s407 = sadd.s32 %s405, %s406
        %s408 = smul.addr %s407, 4
        %s409 = scalar_lea.vmem %s0, %s408
        %p410 = pneg %p62
        %p411 = pneg %p59
        %p412 = pneg %p83
        %p413 = pneg %p80
        %p414 = pneg %p104
        %p415 = pneg %p101
        %p416 = pneg %p125
        %p417 = pneg %p122
        %p418 = pneg %p146
        %p419 = pneg %p143
        %p420 = pneg %p167
        %p421 = pneg %p164
        %p422 = pneg %p188
        %p423 = pneg %p185
        %p424 = pneg %p209
        %p425 = pneg %p206
        %p426 = pneg %p230
        %p427 = pneg %p227
        %p428 = pneg %p251
        %p429 = pneg %p248
        %p430 = pneg %p272
        %p431 = pneg %p269
        %p432 = pneg %p300
        %p433 = pneg %p297
        %s434 = sand.u32 %s287, 1
        %s435 = scalar_lea.sflag [#allocation4], %s434
        %s436 = sand.u32 %s287, 1
        %s437 = smul.addr %s436, 128
        %s438 = scalar_lea.vmem [#allocation7], %s437
        %s439 = smul.u32 16, %s32
        %p440 = scmp.lt.s32.totalorder %s31, 1
        %s441 = scalar_select %p440, %s31, 1
        %p442 = scmp.lt.s32.totalorder %s439, 15
        %s443 = scalar_select %p442, %s439, 15
        %s444 = smul.addr %s441, 16
        %s445 = sadd.s32 %s443, %s444
        %s446 = smul.addr %s445, 4
        %s447 = scalar_lea.vmem %s0, %s446
        %s448 = smul.u32 16, %s32
        %v450 = vld [vmem:[%s447] sm:$0xf]
        %v451 = vld [vmem:[%s447 + $0x4] sm:$0xf]
        %v452 = vld [vmem:[%s447 + $0x8] sm:$0xf]
        %v453 = vld [vmem:[%s447 + $0xc] sm:$0xf]
        %v454 = vld [vmem:[%s447 + $0x10] sm:$0xf]
        %v455 = vld [vmem:[%s447 + $0x14] sm:$0xf]
        %v456 = vld [vmem:[%s447 + $0x18] sm:$0xf]
        %v457 = vld [vmem:[%s447 + $0x1c] sm:$0xf]
        %v458 = vld [vmem:[%s447 + $0x20] sm:$0xf]
        %v459 = vld [vmem:[%s447 + $0x24] sm:$0xf]
        %v460 = vld [vmem:[%s447 + $0x28] sm:$0xf]
        %v461 = vld [vmem:[%s447 + $0x2c] sm:$0xf]
        %v462 = vld [vmem:[%s447 + $0x30] sm:$0xf]
        %v463 = vld [vmem:[%s447 + $0x34] sm:$0xf]
        %v464 = vld [vmem:[%s447 + $0x38] sm:$0xf]
        %v465 = vld [vmem:[%s447 + $0x3c] sm:$0xf]
        %v466 = vld [vmem:[%s1] sm:$0xf]
        %v467 = vld [vmem:[%s2] sm:$0x1]
        %v469 = vperm.slane %v467, 0
        %v487 = vunpack.c.l.b16 %v450
        %v488 = vunpack.c.l.b16 %v451
        %v489 = vunpack.c.l.b16 %v452
        %v490 = vunpack.c.l.b16 %v453
        %v491 = vunpack.c.l.b16 %v454
        %v492 = vunpack.c.l.b16 %v455
        %v493 = vunpack.c.l.b16 %v456
        %v494 = vunpack.c.l.b16 %v457
        %v495 = vunpack.c.l.b16 %v458
        %v496 = vunpack.c.l.b16 %v459
        %v497 = vunpack.c.l.b16 %v460
        %v498 = vunpack.c.l.b16 %v461
        %v499 = vunpack.c.l.b16 %v462
        %v500 = vunpack.c.l.b16 %v463
        %v501 = vunpack.c.l.b16 %v464
        %v502 = vunpack.c.l.b16 %v465
        %v503 = vpack.c.b16 %v488, %v487
        %v504 = vpack.c.b16 %v490, %v489
        %v505 = vpack.c.b16 %v492, %v491
        %v506 = vpack.c.b16 %v494, %v493
        %v507 = vpack.c.b16 %v496, %v495
        %v508 = vpack.c.b16 %v498, %v497
        %v509 = vpack.c.b16 %v500, %v499
        %v510 = vpack.c.b16 %v502, %v501
        %vm511 = vcmask 64512
        %v513 = vsel %vm511, %v503, 0
        %v516 = vsel %vm511, %v504, 0
        %v519 = vsel %vm511, %v505, 0
        %v522 = vsel %vm511, %v506, 0
        %v525 = vsel %vm511, %v507, 0
        %v528 = vsel %vm511, %v508, 0
        %v531 = vsel %vm511, %v509, 0
        %v534 = vsel %vm511, %v510, 0
        %vm536 = vcmask 1043456
        %v538 = vsel %vm536, %v466, 0
        %540 = vmatpush.bf16.msra.mxu0 0
        %541 = vmatpush.bf16.msra.mxu0 0
        %542 = vmatpush.bf16.msra.mxu0 0
        %543 = vmatpush.bf16.msra.mxu0 0
        %544 = vmatpush.bf16.msra.mxu0 0
        %545 = vmatpush.bf16.msra.mxu0 0
        %546 = vmatpush.bf16.msra.mxu0 0
        %547 = vmatpush.bf16.msra.mxu0 %v538
        %548 = vmatmul.bf16.gmra.mxu0 %v513
        %v549 = vpop.f32.mrf.mxu0
        %v550 = vadd.f32 %v469, %v549
        %v551 = vpop.f32.mrf.mxu0
        %v552 = vadd.f32 %v469, %v551
        %553 = vmatmul.bf16.gmra.mxu0 %v516
        %v554 = vpop.f32.mrf.mxu0
        %v555 = vadd.f32 %v469, %v554
        %v556 = vpop.f32.mrf.mxu0
        %v557 = vadd.f32 %v469, %v556
        %558 = vmatmul.bf16.gmra.mxu0 %v519
        %v559 = vpop.f32.mrf.mxu0
        %v560 = vadd.f32 %v469, %v559
        %v561 = vpop.f32.mrf.mxu0
        %v562 = vadd.f32 %v469, %v561
        %563 = vmatmul.bf16.gmra.mxu0 %v522
        %v564 = vpop.f32.mrf.mxu0
        %v565 = vadd.f32 %v469, %v564
        %v566 = vpop.f32.mrf.mxu0
        %v567 = vadd.f32 %v469, %v566
        %568 = vmatmul.bf16.gmra.mxu0 %v525
        %v569 = vpop.f32.mrf.mxu0
        %v570 = vadd.f32 %v469, %v569
        %v571 = vpop.f32.mrf.mxu0
        %v572 = vadd.f32 %v469, %v571
        %573 = vmatmul.bf16.gmra.mxu0 %v528
        %v574 = vpop.f32.mrf.mxu0
        %v575 = vadd.f32 %v469, %v574
        %v576 = vpop.f32.mrf.mxu0
        %v577 = vadd.f32 %v469, %v576
        %578 = vmatmul.bf16.gmra.mxu0 %v531
        %v579 = vpop.f32.mrf.mxu0
        %v580 = vadd.f32 %v469, %v579
        %v581 = vpop.f32.mrf.mxu0
        %v582 = vadd.f32 %v469, %v581
        %583 = vmatmul.bf16.gmra.mxu0 %v534
        %v584 = vpop.f32.mrf.mxu0
        %v585 = vadd.f32 %v469, %v584
        %v586 = vpop.f32.mrf.mxu0
        %v587 = vadd.f32 %v469, %v586
        %588 = vdwg.mxu0
        %v589 = vmax.f32 %v550, 0.0
        %v590 = vmax.f32 %v552, 0.0
        %v591 = vmax.f32 %v555, 0.0
        %v592 = vmax.f32 %v557, 0.0
        %v593 = vmax.f32 %v560, 0.0
        %v594 = vmax.f32 %v562, 0.0
        %v595 = vmax.f32 %v565, 0.0
        %v596 = vmax.f32 %v567, 0.0
        %v597 = vmax.f32 %v570, 0.0
        %v598 = vmax.f32 %v572, 0.0
        %v599 = vmax.f32 %v575, 0.0
        %v600 = vmax.f32 %v577, 0.0
        %v601 = vmax.f32 %v580, 0.0
        %v602 = vmax.f32 %v582, 0.0
        %v603 = vmax.f32 %v585, 0.0
        %v604 = vmax.f32 %v587, 0.0
        %v605 = vpack.c.bf16 %v590, %v589
        %v606 = vpack.c.bf16 %v592, %v591
        %v607 = vpack.c.bf16 %v594, %v593
        %v608 = vpack.c.bf16 %v596, %v595
        %v609 = vpack.c.bf16 %v598, %v597
        %v610 = vpack.c.bf16 %v600, %v599
        %v611 = vpack.c.bf16 %v602, %v601
        %v612 = vpack.c.bf16 %v604, %v603
        %v613 = vld [vmem:[%s3] sm:$0xf]
        %v614 = vld [vmem:[%s3 + $0x4] sm:$0xf]
        %v615 = vld [vmem:[%s3 + $0x8] sm:$0xf]
        %v616 = vld [vmem:[%s3 + $0xc] sm:$0xf]
        %v617 = vld [vmem:[%s3 + $0x10] sm:$0xf]
        %v618 = vld [vmem:[%s3 + $0x14] sm:$0xf]
        %v619 = vld [vmem:[%s3 + $0x18] sm:$0xf]
        %v620 = vld [vmem:[%s3 + $0x1c] sm:$0xf]
        %v621 = vld [vmem:[%s3 + $0x20] sm:$0xf]
        %v622 = vld [vmem:[%s3 + $0x24] sm:$0xf]
        %v623 = vld [vmem:[%s3 + $0x28] sm:$0xf]
        %v624 = vld [vmem:[%s3 + $0x2c] sm:$0xf]
        %v625 = vld [vmem:[%s3 + $0x30] sm:$0xf]
        %v626 = vld [vmem:[%s3 + $0x34] sm:$0xf]
        %v627 = vld [vmem:[%s3 + $0x38] sm:$0xf]
        %v628 = vld [vmem:[%s3 + $0x3c] sm:$0xf]
        %v629 = vld [vmem:[%s4] sm:$0x1]
        %v631 = vperm.slane %v629, 0
        %v649 = vunpack.c.l.b16 %v613
        %v650 = vunpack.c.l.b16 %v614
        %v651 = vunpack.c.l.b16 %v615
        %v652 = vunpack.c.l.b16 %v616
        %v653 = vunpack.c.l.b16 %v617
        %v654 = vunpack.c.l.b16 %v618
        %v655 = vunpack.c.l.b16 %v619
        %v656 = vunpack.c.l.b16 %v620
        %v657 = vunpack.c.l.b16 %v621
        %v658 = vunpack.c.l.b16 %v622
        %v659 = vunpack.c.l.b16 %v623
        %v660 = vunpack.c.l.b16 %v624
        %v661 = vunpack.c.l.b16 %v625
        %v662 = vunpack.c.l.b16 %v626
        %v663 = vunpack.c.l.b16 %v627
        %v664 = vunpack.c.l.b16 %v628
        %v665 = vpack.c.b16 %v650, %v649
        %v666 = vpack.c.b16 %v652, %v651
        %v667 = vpack.c.b16 %v654, %v653
        %v668 = vpack.c.b16 %v656, %v655
        %v669 = vpack.c.b16 %v658, %v657
        %v670 = vpack.c.b16 %v660, %v659
        %v671 = vpack.c.b16 %v662, %v661
        %v672 = vpack.c.b16 %v664, %v663
        %681 = vmatpush.bf16.msra.mxu0 %v672
        %682 = vmatpush.bf16.msra.mxu0 %v671
        %683 = vmatpush.bf16.msra.mxu0 %v670
        %684 = vmatpush.bf16.msra.mxu0 %v669
        %685 = vmatpush.bf16.msra.mxu0 %v668
        %686 = vmatpush.bf16.msra.mxu0 %v667
        %687 = vmatpush.bf16.msra.mxu0 %v666
        %688 = vmatpush.bf16.msra.mxu0 %v665
        %689 = vmatmul.bf16.gmra.mxu0 %v605
        %v690 = vpop.f32.mrf.mxu0
        %v691 = vadd.f32 %v631, %v690
        %v692 = vpop.f32.mrf.mxu0
        %v693 = vadd.f32 %v631, %v692
        %694 = vmatmul.bf16.gmra.mxu0 %v606
        %v695 = vpop.f32.mrf.mxu0
        %v696 = vadd.f32 %v631, %v695
        %v697 = vpop.f32.mrf.mxu0
        %v698 = vadd.f32 %v631, %v697
        %699 = vmatmul.bf16.gmra.mxu0 %v607
        %v700 = vpop.f32.mrf.mxu0
        %v701 = vadd.f32 %v631, %v700
        %v702 = vpop.f32.mrf.mxu0
        %v703 = vadd.f32 %v631, %v702
        %704 = vmatmul.bf16.gmra.mxu0 %v608
        %v705 = vpop.f32.mrf.mxu0
        %v706 = vadd.f32 %v631, %v705
        %v707 = vpop.f32.mrf.mxu0
        %v708 = vadd.f32 %v631, %v707
        %709 = vmatmul.bf16.gmra.mxu0 %v609
        %v710 = vpop.f32.mrf.mxu0
        %v711 = vadd.f32 %v631, %v710
        %v712 = vpop.f32.mrf.mxu0
        %v713 = vadd.f32 %v631, %v712
        %714 = vmatmul.bf16.gmra.mxu0 %v610
        %v715 = vpop.f32.mrf.mxu0
        %v716 = vadd.f32 %v631, %v715
        %v717 = vpop.f32.mrf.mxu0
        %v718 = vadd.f32 %v631, %v717
        %719 = vmatmul.bf16.gmra.mxu0 %v611
        %v720 = vpop.f32.mrf.mxu0
        %v721 = vadd.f32 %v631, %v720
        %v722 = vpop.f32.mrf.mxu0
        %v723 = vadd.f32 %v631, %v722
        %724 = vmatmul.bf16.gmra.mxu0 %v612
        %v725 = vpop.f32.mrf.mxu0
        %v726 = vadd.f32 %v631, %v725
        %v727 = vpop.f32.mrf.mxu0
        %v728 = vadd.f32 %v631, %v727
        %729 = vdwg.mxu0
        %v730 = vmax.f32 %v691, 0.0
        %v731 = vmax.f32 %v693, 0.0
        %v732 = vmax.f32 %v696, 0.0
        %v733 = vmax.f32 %v698, 0.0
        %v734 = vmax.f32 %v701, 0.0
        %v735 = vmax.f32 %v703, 0.0
        %v736 = vmax.f32 %v706, 0.0
        %v737 = vmax.f32 %v708, 0.0
        %v738 = vmax.f32 %v711, 0.0
        %v739 = vmax.f32 %v713, 0.0
        %v740 = vmax.f32 %v716, 0.0
        %v741 = vmax.f32 %v718, 0.0
        %v742 = vmax.f32 %v721, 0.0
        %v743 = vmax.f32 %v723, 0.0
        %v744 = vmax.f32 %v726, 0.0
        %v745 = vmax.f32 %v728, 0.0
        %v746 = vpack.c.bf16 %v731, %v730
        %v747 = vpack.c.bf16 %v733, %v732
        %v748 = vpack.c.bf16 %v735, %v734
        %v749 = vpack.c.bf16 %v737, %v736
        %v750 = vpack.c.bf16 %v739, %v738
        %v751 = vpack.c.bf16 %v741, %v740
        %v752 = vpack.c.bf16 %v743, %v742
        %v753 = vpack.c.bf16 %v745, %v744
        %v754 = vld [vmem:[%s5] sm:$0xf]
        %v755 = vld [vmem:[%s5 + $0x4] sm:$0xf]
        %v756 = vld [vmem:[%s5 + $0x8] sm:$0xf]
        %v757 = vld [vmem:[%s5 + $0xc] sm:$0xf]
        %v758 = vld [vmem:[%s5 + $0x10] sm:$0xf]
        %v759 = vld [vmem:[%s5 + $0x14] sm:$0xf]
        %v760 = vld [vmem:[%s5 + $0x18] sm:$0xf]
        %v761 = vld [vmem:[%s5 + $0x1c] sm:$0xf]
        %v762 = vld [vmem:[%s5 + $0x20] sm:$0xf]
        %v763 = vld [vmem:[%s5 + $0x24] sm:$0xf]
        %v764 = vld [vmem:[%s5 + $0x28] sm:$0xf]
        %v765 = vld [vmem:[%s5 + $0x2c] sm:$0xf]
        %v766 = vld [vmem:[%s5 + $0x30] sm:$0xf]
        %v767 = vld [vmem:[%s5 + $0x34] sm:$0xf]
        %v768 = vld [vmem:[%s5 + $0x38] sm:$0xf]
        %v769 = vld [vmem:[%s5 + $0x3c] sm:$0xf]
        %v770 = vld [vmem:[%s6] sm:$0x1]
        %v772 = vperm.slane %v770, 0
        %v790 = vunpack.c.l.b16 %v754
        %v791 = vunpack.c.l.b16 %v755
        %v792 = vunpack.c.l.b16 %v756
        %v793 = vunpack.c.l.b16 %v757
        %v794 = vunpack.c.l.b16 %v758
        %v795 = vunpack.c.l.b16 %v759
        %v796 = vunpack.c.l.b16 %v760
        %v797 = vunpack.c.l.b16 %v761
        %v798 = vunpack.c.l.b16 %v762
        %v799 = vunpack.c.l.b16 %v763
        %v800 = vunpack.c.l.b16 %v764
        %v801 = vunpack.c.l.b16 %v765
        %v802 = vunpack.c.l.b16 %v766
        %v803 = vunpack.c.l.b16 %v767
        %v804 = vunpack.c.l.b16 %v768
        %v805 = vunpack.c.l.b16 %v769
        %v806 = vpack.c.b16 %v791, %v790
        %v807 = vpack.c.b16 %v793, %v792
        %v808 = vpack.c.b16 %v795, %v794
        %v809 = vpack.c.b16 %v797, %v796
        %v810 = vpack.c.b16 %v799, %v798
        %v811 = vpack.c.b16 %v801, %v800
        %v812 = vpack.c.b16 %v803, %v802
        %v813 = vpack.c.b16 %v805, %v804
        %822 = vmatpush.bf16.msra.mxu0 %v813
        %823 = vmatpush.bf16.msra.mxu0 %v812
        %824 = vmatpush.bf16.msra.mxu0 %v811
        %825 = vmatpush.bf16.msra.mxu0 %v810
        %826 = vmatpush.bf16.msra.mxu0 %v809
        %827 = vmatpush.bf16.msra.mxu0 %v808
        %828 = vmatpush.bf16.msra.mxu0 %v807
        %829 = vmatpush.bf16.msra.mxu0 %v806
        %830 = vmatmul.bf16.gmra.mxu0 %v746
        %v831 = vpop.f32.mrf.mxu0
        %v832 = vadd.f32 %v772, %v831
        %v833 = vpop.f32.mrf.mxu0
        %v834 = vadd.f32 %v772, %v833
        %835 = vmatmul.bf16.gmra.mxu0 %v747
        %v836 = vpop.f32.mrf.mxu0
        %v837 = vadd.f32 %v772, %v836
        %v838 = vpop.f32.mrf.mxu0
        %v839 = vadd.f32 %v772, %v838
        %840 = vmatmul.bf16.gmra.mxu0 %v748
        %v841 = vpop.f32.mrf.mxu0
        %v842 = vadd.f32 %v772, %v841
        %v843 = vpop.f32.mrf.mxu0
        %v844 = vadd.f32 %v772, %v843
        %845 = vmatmul.bf16.gmra.mxu0 %v749
        %v846 = vpop.f32.mrf.mxu0
        %v847 = vadd.f32 %v772, %v846
        %v848 = vpop.f32.mrf.mxu0
        %v849 = vadd.f32 %v772, %v848
        %850 = vmatmul.bf16.gmra.mxu0 %v750
        %v851 = vpop.f32.mrf.mxu0
        %v852 = vadd.f32 %v772, %v851
        %v853 = vpop.f32.mrf.mxu0
        %v854 = vadd.f32 %v772, %v853
        %855 = vmatmul.bf16.gmra.mxu0 %v751
        %v856 = vpop.f32.mrf.mxu0
        %v857 = vadd.f32 %v772, %v856
        %v858 = vpop.f32.mrf.mxu0
        %v859 = vadd.f32 %v772, %v858
        %860 = vmatmul.bf16.gmra.mxu0 %v752
        %v861 = vpop.f32.mrf.mxu0
        %v862 = vadd.f32 %v772, %v861
        %v863 = vpop.f32.mrf.mxu0
        %v864 = vadd.f32 %v772, %v863
        %865 = vmatmul.bf16.gmra.mxu0 %v753
        %v866 = vpop.f32.mrf.mxu0
        %v867 = vadd.f32 %v772, %v866
        %v868 = vpop.f32.mrf.mxu0
        %v869 = vadd.f32 %v772, %v868
        %870 = vdwg.mxu0
        %v871 = vmax.f32 %v832, 0.0
        %v872 = vmax.f32 %v834, 0.0
        %v873 = vmax.f32 %v837, 0.0
        %v874 = vmax.f32 %v839, 0.0
        %v875 = vmax.f32 %v842, 0.0
        %v876 = vmax.f32 %v844, 0.0
        %v877 = vmax.f32 %v847, 0.0
        %v878 = vmax.f32 %v849, 0.0
        %v879 = vmax.f32 %v852, 0.0
        %v880 = vmax.f32 %v854, 0.0
        %v881 = vmax.f32 %v857, 0.0
        %v882 = vmax.f32 %v859, 0.0
        %v883 = vmax.f32 %v862, 0.0
        %v884 = vmax.f32 %v864, 0.0
        %v885 = vmax.f32 %v867, 0.0
        %v886 = vmax.f32 %v869, 0.0
        %v887 = vadd.f32 %v589, %v871
        %v888 = vadd.f32 %v590, %v872
        %v889 = vadd.f32 %v591, %v873
        %v890 = vadd.f32 %v592, %v874
        %v891 = vadd.f32 %v593, %v875
        %v892 = vadd.f32 %v594, %v876
        %v893 = vadd.f32 %v595, %v877
        %v894 = vadd.f32 %v596, %v878
        %v895 = vadd.f32 %v597, %v879
        %v896 = vadd.f32 %v598, %v880
        %v897 = vadd.f32 %v599, %v881
        %v898 = vadd.f32 %v600, %v882
        %v899 = vadd.f32 %v601, %v883
        %v900 = vadd.f32 %v602, %v884
        %v901 = vadd.f32 %v603, %v885
        %v902 = vadd.f32 %v604, %v886
        %v903 = vpack.c.bf16 %v888, %v887
        %v904 = vpack.c.bf16 %v890, %v889
        %v905 = vpack.c.bf16 %v892, %v891
        %v906 = vpack.c.bf16 %v894, %v893
        %v907 = vpack.c.bf16 %v896, %v895
        %v908 = vpack.c.bf16 %v898, %v897
        %v909 = vpack.c.bf16 %v900, %v899
        %v910 = vpack.c.bf16 %v902, %v901
        %v911 = vld [vmem:[#allocation2] sm:$0xf]
        %v912 = vld [vmem:[#allocation2 + $0x4] sm:$0xf]
        %v913 = vld [vmem:[#allocation2 + $0x8] sm:$0xf]
        %v914 = vld [vmem:[#allocation2 + $0xc] sm:$0xf]
        %v915 = vld [vmem:[#allocation2 + $0x10] sm:$0xf]
        %v916 = vld [vmem:[#allocation2 + $0x14] sm:$0xf]
        %v917 = vld [vmem:[#allocation2 + $0x18] sm:$0xf]
        %v918 = vld [vmem:[#allocation2 + $0x1c] sm:$0xf]
        %v919 = vld [vmem:[#allocation2 + $0x20] sm:$0xf]
        %v920 = vld [vmem:[#allocation2 + $0x24] sm:$0xf]
        %v921 = vld [vmem:[#allocation2 + $0x28] sm:$0xf]
        %v922 = vld [vmem:[#allocation2 + $0x2c] sm:$0xf]
        %v923 = vld [vmem:[#allocation2 + $0x30] sm:$0xf]
        %v924 = vld [vmem:[#allocation2 + $0x34] sm:$0xf]
        %v925 = vld [vmem:[#allocation2 + $0x38] sm:$0xf]
        %v926 = vld [vmem:[#allocation2 + $0x3c] sm:$0xf]
        %v927 = vld [vmem:[%s8] sm:$0x1]
        %v929 = vperm.slane %v927, 0
        %v947 = vunpack.c.l.b16 %v911
        %v948 = vunpack.c.l.b16 %v912
        %v949 = vunpack.c.l.b16 %v913
        %v950 = vunpack.c.l.b16 %v914
        %v951 = vunpack.c.l.b16 %v915
        %v952 = vunpack.c.l.b16 %v916
        %v953 = vunpack.c.l.b16 %v917
        %v954 = vunpack.c.l.b16 %v918
        %v955 = vunpack.c.l.b16 %v919
        %v956 = vunpack.c.l.b16 %v920
        %v957 = vunpack.c.l.b16 %v921
        %v958 = vunpack.c.l.b16 %v922
        %v959 = vunpack.c.l.b16 %v923
        %v960 = vunpack.c.l.b16 %v924
        %v961 = vunpack.c.l.b16 %v925
        %v962 = vunpack.c.l.b16 %v926
        %v963 = vpack.c.b16 %v948, %v947
        %v964 = vpack.c.b16 %v950, %v949
        %v965 = vpack.c.b16 %v952, %v951
        %v966 = vpack.c.b16 %v954, %v953
        %v967 = vpack.c.b16 %v956, %v955
        %v968 = vpack.c.b16 %v958, %v957
        %v969 = vpack.c.b16 %v960, %v959
        %v970 = vpack.c.b16 %v962, %v961
        %979 = vmatpush.bf16.msra.mxu0 %v970
        %980 = vmatpush.bf16.msra.mxu0 %v969
        %981 = vmatpush.bf16.msra.mxu0 %v968
        %982 = vmatpush.bf16.msra.mxu0 %v967
        %983 = vmatpush.bf16.msra.mxu0 %v966
        %984 = vmatpush.bf16.msra.mxu0 %v965
        %985 = vmatpush.bf16.msra.mxu0 %v964
        %986 = vmatpush.bf16.msra.mxu0 %v963
        %987 = vmatmul.bf16.gmra.mxu0 %v903
        %v988 = vpop.f32.mrf.mxu0
        %v989 = vadd.f32 %v929, %v988
        %v990 = vpop.f32.mrf.mxu0
        %v991 = vadd.f32 %v929, %v990
        %992 = vmatmul.bf16.gmra.mxu0 %v904
        %v993 = vpop.f32.mrf.mxu0
        %v994 = vadd.f32 %v929, %v993
        %v995 = vpop.f32.mrf.mxu0
        %v996 = vadd.f32 %v929, %v995
        %997 = vmatmul.bf16.gmra.mxu0 %v905
        %v998 = vpop.f32.mrf.mxu0
        %v999 = vadd.f32 %v929, %v998
        %v1000 = vpop.f32.mrf.mxu0
        %v1001 = vadd.f32 %v929, %v1000
        %1002 = vmatmul.bf16.gmra.mxu0 %v906
        %v1003 = vpop.f32.mrf.mxu0
        %v1004 = vadd.f32 %v929, %v1003
        %v1005 = vpop.f32.mrf.mxu0
        %v1006 = vadd.f32 %v929, %v1005
        %1007 = vmatmul.bf16.gmra.mxu0 %v907
        %v1008 = vpop.f32.mrf.mxu0
        %v1009 = vadd.f32 %v929, %v1008
        %v1010 = vpop.f32.mrf.mxu0
        %v1011 = vadd.f32 %v929, %v1010
        %1012 = vmatmul.bf16.gmra.mxu0 %v908
        %v1013 = vpop.f32.mrf.mxu0
        %v1014 = vadd.f32 %v929, %v1013
        %v1015 = vpop.f32.mrf.mxu0
        %v1016 = vadd.f32 %v929, %v1015
        %1017 = vmatmul.bf16.gmra.mxu0 %v909
        %v1018 = vpop.f32.mrf.mxu0
        %v1019 = vadd.f32 %v929, %v1018
        %v1020 = vpop.f32.mrf.mxu0
        %v1021 = vadd.f32 %v929, %v1020
        %1022 = vmatmul.bf16.gmra.mxu0 %v910
        %v1023 = vpop.f32.mrf.mxu0
        %v1024 = vadd.f32 %v929, %v1023
        %v1025 = vpop.f32.mrf.mxu0
        %v1026 = vadd.f32 %v929, %v1025
        %1027 = vdwg.mxu0
        %v1028 = vmax.f32 %v989, 0.0
        %v1029 = vmax.f32 %v991, 0.0
        %v1030 = vmax.f32 %v994, 0.0
        %v1031 = vmax.f32 %v996, 0.0
        %v1032 = vmax.f32 %v999, 0.0
        %v1033 = vmax.f32 %v1001, 0.0
        %v1034 = vmax.f32 %v1004, 0.0
        %v1035 = vmax.f32 %v1006, 0.0
        %v1036 = vmax.f32 %v1009, 0.0
        %v1037 = vmax.f32 %v1011, 0.0
        %v1038 = vmax.f32 %v1014, 0.0
        %v1039 = vmax.f32 %v1016, 0.0
        %v1040 = vmax.f32 %v1019, 0.0
        %v1041 = vmax.f32 %v1021, 0.0
        %v1042 = vmax.f32 %v1024, 0.0
        %v1043 = vmax.f32 %v1026, 0.0
        %v1044 = vpack.c.bf16 %v1029, %v1028
        %v1045 = vpack.c.bf16 %v1031, %v1030
        %v1046 = vpack.c.bf16 %v1033, %v1032
        %v1047 = vpack.c.bf16 %v1035, %v1034
        %v1048 = vpack.c.bf16 %v1037, %v1036
        %v1049 = vpack.c.bf16 %v1039, %v1038
        %v1050 = vpack.c.bf16 %v1041, %v1040
        %v1051 = vpack.c.bf16 %v1043, %v1042
        %v1052 = vld [vmem:[#allocation5] sm:$0xf]
        %v1053 = vld [vmem:[#allocation5 + $0x4] sm:$0xf]
        %v1054 = vld [vmem:[#allocation5 + $0x8] sm:$0xf]
        %v1055 = vld [vmem:[#allocation5 + $0xc] sm:$0xf]
        %v1056 = vld [vmem:[#allocation5 + $0x10] sm:$0xf]
        %v1057 = vld [vmem:[#allocation5 + $0x14] sm:$0xf]
        %v1058 = vld [vmem:[#allocation5 + $0x18] sm:$0xf]
        %v1059 = vld [vmem:[#allocation5 + $0x1c] sm:$0xf]
        %v1060 = vld [vmem:[#allocation5 + $0x20] sm:$0xf]
        %v1061 = vld [vmem:[#allocation5 + $0x24] sm:$0xf]
        %v1062 = vld [vmem:[#allocation5 + $0x28] sm:$0xf]
        %v1063 = vld [vmem:[#allocation5 + $0x2c] sm:$0xf]
        %v1064 = vld [vmem:[#allocation5 + $0x30] sm:$0xf]
        %v1065 = vld [vmem:[#allocation5 + $0x34] sm:$0xf]
        %v1066 = vld [vmem:[#allocation5 + $0x38] sm:$0xf]
        %v1067 = vld [vmem:[#allocation5 + $0x3c] sm:$0xf]
        %v1068 = vld [vmem:[%s10] sm:$0x1]
        %v1070 = vperm.slane %v1068, 0
        %v1088 = vunpack.c.l.b16 %v1052
        %v1089 = vunpack.c.l.b16 %v1053
        %v1090 = vunpack.c.l.b16 %v1054
        %v1091 = vunpack.c.l.b16 %v1055
        %v1092 = vunpack.c.l.b16 %v1056
        %v1093 = vunpack.c.l.b16 %v1057
        %v1094 = vunpack.c.l.b16 %v1058
        %v1095 = vunpack.c.l.b16 %v1059
        %v1096 = vunpack.c.l.b16 %v1060
        %v1097 = vunpack.c.l.b16 %v1061
        %v1098 = vunpack.c.l.b16 %v1062
        %v1099 = vunpack.c.l.b16 %v1063
        %v1100 = vunpack.c.l.b16 %v1064
        %v1101 = vunpack.c.l.b16 %v1065
        %v1102 = vunpack.c.l.b16 %v1066
        %v1103 = vunpack.c.l.b16 %v1067
        %v1104 = vpack.c.b16 %v1089, %v1088
        %v1105 = vpack.c.b16 %v1091, %v1090
        %v1106 = vpack.c.b16 %v1093, %v1092
        %v1107 = vpack.c.b16 %v1095, %v1094
        %v1108 = vpack.c.b16 %v1097, %v1096
        %v1109 = vpack.c.b16 %v1099, %v1098
        %v1110 = vpack.c.b16 %v1101, %v1100
        %v1111 = vpack.c.b16 %v1103, %v1102
        %1120 = vmatpush.bf16.msra.mxu0 %v1111
        %1121 = vmatpush.bf16.msra.mxu0 %v1110
        %1122 = vmatpush.bf16.msra.mxu0 %v1109
        %1123 = vmatpush.bf16.msra.mxu0 %v1108
        %1124 = vmatpush.bf16.msra.mxu0 %v1107
        %1125 = vmatpush.bf16.msra.mxu0 %v1106
        %1126 = vmatpush.bf16.msra.mxu0 %v1105
        %1127 = vmatpush.bf16.msra.mxu0 %v1104
        %1128 = vmatmul.bf16.gmra.mxu0 %v1044
        %v1129 = vpop.f32.mrf.mxu0
        %v1130 = vadd.f32 %v1070, %v1129
        %v1131 = vpop.f32.mrf.mxu0
        %v1132 = vadd.f32 %v1070, %v1131
        %1133 = vmatmul.bf16.gmra.mxu0 %v1045
        %v1134 = vpop.f32.mrf.mxu0
        %v1135 = vadd.f32 %v1070, %v1134
        %v1136 = vpop.f32.mrf.mxu0
        %v1137 = vadd.f32 %v1070, %v1136
        %1138 = vmatmul.bf16.gmra.mxu0 %v1046
        %v1139 = vpop.f32.mrf.mxu0
        %v1140 = vadd.f32 %v1070, %v1139
        %v1141 = vpop.f32.mrf.mxu0
        %v1142 = vadd.f32 %v1070, %v1141
        %1143 = vmatmul.bf16.gmra.mxu0 %v1047
        %v1144 = vpop.f32.mrf.mxu0
        %v1145 = vadd.f32 %v1070, %v1144
        %v1146 = vpop.f32.mrf.mxu0
        %v1147 = vadd.f32 %v1070, %v1146
        %1148 = vmatmul.bf16.gmra.mxu0 %v1048
        %v1149 = vpop.f32.mrf.mxu0
        %v1150 = vadd.f32 %v1070, %v1149
        %v1151 = vpop.f32.mrf.mxu0
        %v1152 = vadd.f32 %v1070, %v1151
        %1153 = vmatmul.bf16.gmra.mxu0 %v1049
        %v1154 = vpop.f32.mrf.mxu0
        %v1155 = vadd.f32 %v1070, %v1154
        %v1156 = vpop.f32.mrf.mxu0
        %v1157 = vadd.f32 %v1070, %v1156
        %1158 = vmatmul.bf16.gmra.mxu0 %v1050
        %v1159 = vpop.f32.mrf.mxu0
        %v1160 = vadd.f32 %v1070, %v1159
        %v1161 = vpop.f32.mrf.mxu0
        %v1162 = vadd.f32 %v1070, %v1161
        %1163 = vmatmul.bf16.gmra.mxu0 %v1051
        %v1164 = vpop.f32.mrf.mxu0
        %v1165 = vadd.f32 %v1070, %v1164
        %v1166 = vpop.f32.mrf.mxu0
        %v1167 = vadd.f32 %v1070, %v1166
        %1168 = vdwg.mxu0
        %v1169 = vmax.f32 %v1130, 0.0
        %v1170 = vmax.f32 %v1132, 0.0
        %v1171 = vmax.f32 %v1135, 0.0
        %v1172 = vmax.f32 %v1137, 0.0
        %v1173 = vmax.f32 %v1140, 0.0
        %v1174 = vmax.f32 %v1142, 0.0
        %v1175 = vmax.f32 %v1145, 0.0
        %v1176 = vmax.f32 %v1147, 0.0
        %v1177 = vmax.f32 %v1150, 0.0
        %v1178 = vmax.f32 %v1152, 0.0
        %v1179 = vmax.f32 %v1155, 0.0
        %v1180 = vmax.f32 %v1157, 0.0
        %v1181 = vmax.f32 %v1160, 0.0
        %v1182 = vmax.f32 %v1162, 0.0
        %v1183 = vmax.f32 %v1165, 0.0
        %v1184 = vmax.f32 %v1167, 0.0
        %v1185 = vadd.f32 %v887, %v1169
        %v1186 = vadd.f32 %v888, %v1170
        %v1187 = vadd.f32 %v889, %v1171
        %v1188 = vadd.f32 %v890, %v1172
        %v1189 = vadd.f32 %v891, %v1173
        %v1190 = vadd.f32 %v892, %v1174
        %v1191 = vadd.f32 %v893, %v1175
        %v1192 = vadd.f32 %v894, %v1176
        %v1193 = vadd.f32 %v895, %v1177
        %v1194 = vadd.f32 %v896, %v1178
        %v1195 = vadd.f32 %v897, %v1179
        %v1196 = vadd.f32 %v898, %v1180
        %v1197 = vadd.f32 %v899, %v1181
        %v1198 = vadd.f32 %v900, %v1182
        %v1199 = vadd.f32 %v901, %v1183
        %v1200 = vadd.f32 %v902, %v1184
        %1201 = vxpose.xlu0.b32.start [1/16] %v1185, 128
        %1202 = vxpose.xlu0.b32.cont [2/16] %v1186, 128
        %1203 = vxpose.xlu0.b32.cont [3/16] %v1187, 128
        %1204 = vxpose.xlu0.b32.cont [4/16] %v1188, 128
        %1205 = vxpose.xlu0.b32.cont [5/16] %v1189, 128
        %1206 = vxpose.xlu0.b32.cont [6/16] %v1190, 128
        %1207 = vxpose.xlu0.b32.cont [7/16] %v1191, 128
        %1208 = vxpose.xlu0.b32.cont [8/16] %v1192, 128
        %1209 = vxpose.xlu0.b32.cont [9/16] %v1193, 128
        %1210 = vxpose.xlu0.b32.cont [10/16] %v1194, 128
        %1211 = vxpose.xlu0.b32.cont [11/16] %v1195, 128
        %1212 = vxpose.xlu0.b32.cont [12/16] %v1196, 128
        %1213 = vxpose.xlu0.b32.cont [13/16] %v1197, 128
        %1214 = vxpose.xlu0.b32.cont [14/16] %v1198, 128
        %1215 = vxpose.xlu0.b32.cont [15/16] %v1199, 128
        %1216 = vxpose.xlu0.b32.end [16/16] %v1200, 128
        %v1217 = vpop.trf.xlu0
        %v1218 = vpop.trf.xlu0
        %v1219 = vpop.trf.xlu0
        %v1220 = vpop.trf.xlu0
        %v1221 = vpop.trf.xlu0
        %v1222 = vpop.trf.xlu0
        %v1223 = vpop.trf.xlu0
        %v1224 = vpop.trf.xlu0
        %v1225 = vpop.trf.xlu0
        %v1226 = vpop.trf.xlu0
        %v1227 = vpop.trf.xlu0
        %v1228 = vpop.trf.xlu0
        %v1229 = vpop.trf.xlu0
        %v1230 = vpop.trf.xlu0
        %v1231 = vpop.trf.xlu0
        %v1232 = vpop.trf.xlu0
        %1233 = vst [vmem:[%s438] sm:$0xff] %v1217
        %1234 = vst [vmem:[%s438 + $0x8] sm:$0xff] %v1218
        %1235 = vst [vmem:[%s438 + $0x10] sm:$0xff] %v1219
        %1236 = vst [vmem:[%s438 + $0x18] sm:$0xff] %v1220
        %1237 = vst [vmem:[%s438 + $0x20] sm:$0xff] %v1221
        %1238 = vst [vmem:[%s438 + $0x28] sm:$0xff] %v1222
        %1239 = vst [vmem:[%s438 + $0x30] sm:$0xff] %v1223
        %1240 = vst [vmem:[%s438 + $0x38] sm:$0xff] %v1224
        %1241 = vst [vmem:[%s438 + $0x40] sm:$0xff] %v1225
        %1242 = vst [vmem:[%s438 + $0x48] sm:$0xff] %v1226
        %1243 = vst [vmem:[%s438 + $0x50] sm:$0xff] %v1227
        %1244 = vst [vmem:[%s438 + $0x58] sm:$0xff] %v1228
        %1245 = vst [vmem:[%s438 + $0x60] sm:$0xff] %v1229
        %1246 = vst [vmem:[%s438 + $0x68] sm:$0xff] %v1230
        %1247 = vst [vmem:[%s438 + $0x70] sm:$0xff] %v1231
        %1248 = vst [vmem:[%s438 + $0x78] sm:$0xff] %v1232
        %s1249 = sand.u32 %s287, 1
        %s1250 = scalar_lea.sflag [#allocation4], %s1249
        %s1251 = sand.u32 %s287, 1
        %s1252 = smul.addr %s1251, 128
        %s1253 = scalar_lea.vmem [#allocation7], %s1252
        // Predicated region
        $region73: #{tpu_custom_call.1} parent=63 // pred_check
          %p1254 = pneg %p297
        $region74: #{tpu_custom_call.1} parent=63 // pred_check_branch
          %1256 = sbr.rel (%p1254) target = $region76
        $region75: #{tpu_custom_call.1} parent=63 // pred_region
          %1258 = vsyncadd %s1250, 0
          %s1259 = smul.addr %s31, 16
          %s1260 = sadd.s32 %s32, %s1259
          %s1261 = smul.addr %s1260, 8
          %s1262 = scalar_lea.hbm %s11, %s1261
          %s1263 = sshll.u32 %s1253, 4
          %s1264 = int_to_ptr.vmem [resolvable:$true] %s1263
          %s1265 = sshll.u32 %s1262, 4
          %s1266 = int_to_ptr.hbm [resolvable:$true] %s1265
          %1271 = dma.vmem_to_hbm [thread:$0]  %s1264, 2048, %s1266, %s1250, 128, 128, 8
        $region76: #{tpu_custom_call.1} parent=63 // pred_fallthru
          _
      $region64: #{tpu_custom_call.1} parent=5 // pred_fallthru
        _
      %p1272 = scmp.le.s32.totalorder 2, %s22
      // Predicated region
      $region77: #{tpu_custom_call.1} parent=5 // pred_check
        %p1273 = pneg %p1272
      $region78: #{tpu_custom_call.1} parent=5 // pred_check_branch
        %1275 = sbr.rel (%p1273) target = $region80
      $region79: #{tpu_custom_call.1} parent=5 // pred_region
        %s1276 = ssub.s32 %s22, 2
        // Predicated region
        $region81: #{tpu_custom_call.1} parent=79 // pred_check
          %p1277 = pneg %p303
        $region82: #{tpu_custom_call.1} parent=79 // pred_check_branch
          %1279 = sbr.rel (%p1277) target = $region84
        $region83: #{tpu_custom_call.1} parent=79 // pred_region
          %s1280 = sand.u32 %s288, 1
          %s1281 = scalar_lea.sflag [#allocation4], %s1280
          %s1282 = sand.u32 %s288, 1
          %s1283 = smul.addr %s1282, 128
          %s1284 = scalar_lea.vmem [#allocation7], %s1283
          %1286 = dma.done %s1281, 2048
        $region84: #{tpu_custom_call.1} parent=79 // pred_fallthru
          _
      $region80: #{tpu_custom_call.1} parent=5 // pred_fallthru
        _
    $region6: #{tpu_custom_call.1} parent=1 // loop_footer
      %s26 = sadd.s32 1, %s22
    $region7: #{tpu_custom_call.1} parent=1 // loop_footer_branch
      %21 = sbr.rel target = $region3
    $region8: #{tpu_custom_call.1} parent=1 // loop_exit
      _
    %1287 = vsyncpa [#allocation3], 1
    %s1288 = scalar_lea.sflag [#allocation3], 1
    %1289 = vsyncpa %s1288, 1
    %1290 = vsyncpa [#allocation6], 1
    %1291 = vsyncpa [#allocation4], 1
    %s1292 = scalar_lea.sflag [#allocation4], 1
    %1293 = vsyncpa %s1292, 1

</llo_original>
